<compile_context>
chip_gen: v5e
topology: v5e:2x2
jax: 0.10.0
libtpu: 0.0.40
codegen_flags: <defaults>
</compile_context>

<pallas_src>
import functools

import jax
import jax.numpy as jnp
from jax.experimental import pallas as pl
from jax.experimental.pallas import tpu as pltpu


def _round_up(v, m):
    return (v + m - 1) // m * m


def _meta_average_kernel(col_ref, g_ref, out_ref, acc_ref, cnt_ref, *, start_right):
    """Scatter-mean of pre-gathered rows into classes [start_right, N).

    col_ref : [1, m_tile] int32      class id per gathered row (-1 pad = never matches)
    g_ref   : [m_tile, d_tile]       gathered embeddings x[src] (current block)
    out_ref : [class_tile, d_tile]   averaged embeddings for this (class, D) tile
    acc_ref : [class_tile, d_tile]   f32 running sums   (VMEM scratch)
    cnt_ref : [class_tile, 1]        f32 running counts (VMEM scratch)
    """
    c = pl.program_id(0)              # class tile
    m = pl.program_id(2)              # M (reduction) tile

    @pl.when(m == 0)
    def _():
        acc_ref[...] = jnp.zeros_like(acc_ref)
        cnt_ref[...] = jnp.zeros_like(cnt_ref)

    class_tile = acc_ref.shape[0]
    m_tile = col_ref.shape[1]

    col = col_ref[...]                                                    # [1, m_tile]
    class_ids = (jax.lax.broadcasted_iota(jnp.int32, (class_tile, m_tile), 0)
                 + (start_right + c * class_tile))
    # One-hot built directly in MXU-native [class, M] orientation.  Class ids are
    # all >= start_right >= 0, so out-of-range cols (>= N) and -1 padding never
    # match -- no extra validity mask needed.
    onehot = class_ids == col                                             # [C, Mt] bool

    # scatter-sum on the MXU: [C, Mt] @ [Mt, Dt], f32 accumulation.
    acc_ref[...] += jnp.dot(onehot.astype(g_ref.dtype), g_ref[...],
                            preferred_element_type=jnp.float32)
    # Per-class counts via lane reduction (XLU slot, overlaps the matmul).
    cnt_ref[...] += jnp.sum(onehot.astype(jnp.float32), axis=1, keepdims=True)

    @pl.when(m == pl.num_programs(2) - 1)
    def _():
        inv = 1.0 / jnp.maximum(cnt_ref[...], 1.0)                        # [C, 1]
        out_ref[...] = (acc_ref[...] * inv).astype(out_ref.dtype)


def meta_average(x, input_seqs, start_right, *,
                 class_tile=256, d_tile=512, m_tile=512):
    """x: [N, D]; input_seqs: [B, L] int32 (L even); start_right: static Python int."""
    N, D = x.shape
    start_right = int(start_right)
    if start_right >= N:                      # nothing to average -> pure passthrough
        return x

    src = input_seqs[:, ::2].reshape(-1).astype(jnp.int32)                # [M]
    col = input_seqs[:, 1::2].reshape(-1).astype(jnp.int32)               # [M]
    M = src.shape[0]
    NR = N - start_right                      # number of averaged output rows

    # Gather outside the kernel: O(M*D) bytes moved, no O(M*N*D) matmul.
    # TODO(synk): PyTorch wraps negative gather indices; assumed non-negative here.
    gathered = jnp.take(x, src, axis=0)                                   # [M, D]

    # Tile sizes (clamped to the padded problem size, keeping (8, 128) alignment).
    class_tile = min(class_tile, _round_up(NR, 8))
    d_tile = min(d_tile, _round_up(D, 128))
    m_tile = min(m_tile, _round_up(M, 128))
    NR_p = _round_up(NR, class_tile)
    D_p = _round_up(D, d_tile)
    M_p = _round_up(M, m_tile)

    gathered = jnp.pad(gathered, ((0, M_p - M), (0, D_p - D)))
    # Pad class ids with -1 so padded rows can never hit any class (incl. class 0).
    col = jnp.pad(col, (0, M_p - M), constant_values=-1).reshape(1, M_p)

    grid = (NR_p // class_tile, D_p // d_tile, M_p // m_tile)

    avg = pl.pallas_call(
        functools.partial(_meta_average_kernel, start_right=start_right),
        out_shape=jax.ShapeDtypeStruct((NR_p, D_p), x.dtype),
        grid_spec=pltpu.PrefetchScalarGridSpec(
            num_scalar_prefetch=0,
            grid=grid,
            in_specs=[
                pl.BlockSpec((1, m_tile), lambda c, d, m: (0, m)),        # col ids
                pl.BlockSpec((m_tile, d_tile), lambda c, d, m: (m, d)),   # gathered
            ],
            out_specs=pl.BlockSpec((class_tile, d_tile), lambda c, d, m: (c, d)),
            scratch_shapes=[
                pltpu.VMEM((class_tile, d_tile), jnp.float32),            # sums
                pltpu.VMEM((class_tile, 1), jnp.float32),                 # counts
            ],
        ),
        compiler_params=pltpu.CompilerParams(
            dimension_semantics=("parallel", "parallel", "arbitrary")),
    )(col, gathered)

    # Rows [0, start_right) pass through x untouched; append the averaged tail.
    return jnp.concatenate([x[:start_right], avg[:NR, :D]], axis=0)


def meta_average_ref(x, input_seqs, start_right):
    """Pure-JAX reference (mirrors the PyTorch code)."""
    N, D = x.shape
    src = input_seqs[:, ::2].reshape(-1)
    col = input_seqs[:, 1::2].reshape(-1)
    emb = x[src]
    valid = col < N
    colc = jnp.where(valid, col, N)  # route invalid classes to a dump bucket
    sums = jax.ops.segment_sum(jnp.where(valid[:, None], emb, 0.0), colc,
                               num_segments=N + 1)[:N]
    counts = jax.ops.segment_sum(valid.astype(jnp.float32), colc,
                                 num_segments=N + 1)[:N]
    avg = sums / jnp.maximum(counts, 1.0)[:, None]
    row = jnp.arange(N)[:, None]
    return jnp.where(row < start_right, x, avg)


def _make_inputs(key, N, D, B, L, start_right, id_slack):
    k1, k2, k3 = jax.random.split(key, 3)
    x = jax.random.normal(k1, (N, D), dtype=jnp.float32)
    src = jax.random.randint(k2, (B, L // 2), 0, N)                 # gather indices
    col = jax.random.randint(k3, (B, L // 2), 0, N + id_slack)      # some >= N -> masked
    input_seqs = jnp.zeros((B, L), dtype=jnp.int32)
    input_seqs = input_seqs.at[:, ::2].set(src)
    input_seqs = input_seqs.at[:, 1::2].set(col)
    return x, input_seqs


if __name__ == "__main__":
    key = jax.random.PRNGKey(0)
    k_small, k_big = jax.random.split(key, 2)

    # Test 1: small shapes matching the module's toy config (single-tile grid).
    N, D, B, L, start_right = 16, 32, 4, 8, 8
    x, input_seqs = _make_inputs(k_small, N, D, B, L, start_right, id_slack=4)
    out = meta_average(x, input_seqs, start_right)
    jax.block_until_ready(out)
    ref = meta_average_ref(x, input_seqs, start_right)
    assert out.shape == (N, D)
    assert jnp.allclose(out, ref, atol=1e-4, rtol=1e-4), "small-case mismatch vs reference"

    # Test 2: forces a multi-tile grid (3 class tiles x 2 D tiles x 2 M tiles) with
    # M/class/D padding, exercising the accumulator + masking paths.
    N2, D2, B2, L2, start_right2 = 192, 160, 30, 16, 80
    x2, input_seqs2 = _make_inputs(k_big, N2, D2, B2, L2, start_right2, id_slack=20)
    out2 = meta_average(x2, input_seqs2, start_right2,
                        class_tile=48, d_tile=128, m_tile=128)
    jax.block_until_ready(out2)
    ref2 = meta_average_ref(x2, input_seqs2, start_right2)
    assert out2.shape == (N2, D2)
    assert jnp.allclose(out2, ref2, atol=1e-4, rtol=1e-4), "tiled-case mismatch vs reference"

    print("KERNEL_OK")
</pallas_src>

<mosaic_0001>
module attributes {stable_mosaic.version = 11 : i64} {
  func.func @_meta_average_kernel(%arg0: i32, %arg1: i32, %arg2: i32, %arg3: memref<1x128xi32, #tpu.memory_space<vmem>>, %arg4: memref<128x128xf32, #tpu.memory_space<vmem>>, %arg5: memref<8x128xf32, #tpu.memory_space<vmem>>, %arg6: memref<8x128xf32, #tpu.memory_space<vmem>>, %arg7: memref<8x1xf32, #tpu.memory_space<vmem>>) attributes {dimension_semantics = [#tpu.dimension_semantics<parallel>, #tpu.dimension_semantics<parallel>, #tpu.dimension_semantics<arbitrary>], iteration_bounds = array<i64: 1, 1, 1>, scalar_prefetch = 0 : i64, scratch_operands = 2 : i64, tpu.core_type = #tpu.core_type<tc>, window_params = [{transform_indices = @transform_0, window_bounds = array<i64: 1, 128>}, {transform_indices = @transform_1, window_bounds = array<i64: 128, 128>}, {transform_indices = @transform_2, window_bounds = array<i64: 8, 128>}]} {
    %c0_i32 = arith.constant 0 : i32
    %0 = arith.cmpi eq, %arg2, %c0_i32 : i32
    %1 = arith.extui %0 : i1 to i32
    %c0_i32_0 = arith.constant 0 : i32
    %2 = arith.cmpi ne, %1, %c0_i32_0 : i32
    scf.if %2 {
      %cst_16 = arith.constant 0.000000e+00 : f32
      %28 = vector.broadcast %cst_16 : f32 to vector<8x128xf32>
      %c0_17 = arith.constant 0 : index
      %c0_18 = arith.constant 0 : index
      %29 = vector.load %arg6[%c0_17, %c0_18] : memref<8x128xf32, #tpu.memory_space<vmem>>, vector<8x128xf32>
      tpu.vector_store %arg6[%c0_17, %c0_18], %28 {strides = array<i32>} : memref<8x128xf32, #tpu.memory_space<vmem>>, vector<8x128xf32>,
      %cst_19 = arith.constant 0.000000e+00 : f32
      %30 = vector.broadcast %cst_19 : f32 to vector<8x1xf32>
      %c0_20 = arith.constant 0 : index
      %c0_21 = arith.constant 0 : index
      %31 = vector.load %arg7[%c0_20, %c0_21] : memref<8x1xf32, #tpu.memory_space<vmem>>, vector<8x1xf32>
      tpu.vector_store %arg7[%c0_20, %c0_21], %30 {strides = array<i32>} : memref<8x1xf32, #tpu.memory_space<vmem>>, vector<8x1xf32>,
    } else {
    }
    %c0 = arith.constant 0 : index
    %c0_1 = arith.constant 0 : index
    %3 = vector.load %arg3[%c0, %c0_1] : memref<1x128xi32, #tpu.memory_space<vmem>>, vector<1x128xi32>
    %4 = tpu.iota {dimensions = array<i32: 0>} : vector<8x128xi32>
    %c8_i32 = arith.constant 8 : i32
    %5 = arith.muli %arg0, %c8_i32 : i32
    %c8_i32_2 = arith.constant 8 : i32
    %6 = arith.addi %c8_i32_2, %5 : i32
    %7 = vector.broadcast %6 : i32 to vector<8x128xi32>
    %8 = arith.addi %4, %7 : vector<8x128xi32>
    %9 = vector.broadcast %3 : vector<1x128xi32> to vector<8x128xi32>
    %10 = arith.cmpi eq, %8, %9 : vector<8x128xi32>
    %c0_3 = arith.constant 0 : index
    %c0_4 = arith.constant 0 : index
    %11 = vector.load %arg6[%c0_3, %c0_4] : memref<8x128xf32, #tpu.memory_space<vmem>>, vector<8x128xf32>
    %12 = arith.extui %10 : vector<8x128xi1> to vector<8x128xi32>
    %13 = arith.sitofp %12 : vector<8x128xi32> to vector<8x128xf32>
    %c0_5 = arith.constant 0 : index
    %c0_6 = arith.constant 0 : index
    %14 = vector.load %arg4[%c0_5, %c0_6] : memref<128x128xf32, #tpu.memory_space<vmem>>, vector<128x128xf32>
    %cst = arith.constant dense<0.000000e+00> : vector<8x128xf32>
    %15 = tpu.matmul %13, %14, %cst {dimension_numbers = #tpu.dot_dimension_numbers<[1], [0], [0], [1], [0, 0, 1, 1], [], []>} : vector<8x128xf32>, vector<128x128xf32>, vector<8x128xf32> -> vector<8x128xf32>
    %16 = arith.addf %11, %15 : vector<8x128xf32>
    %c0_7 = arith.constant 0 : index
    %c0_8 = arith.constant 0 : index
    %17 = vector.load %arg6[%c0_7, %c0_8] : memref<8x128xf32, #tpu.memory_space<vmem>>, vector<8x128xf32>
    tpu.vector_store %arg6[%c0_7, %c0_8], %16 {strides = array<i32>} : memref<8x128xf32, #tpu.memory_space<vmem>>, vector<8x128xf32>,
    %c0_9 = arith.constant 0 : index
    %c0_10 = arith.constant 0 : index
    %18 = vector.load %arg7[%c0_9, %c0_10] : memref<8x1xf32, #tpu.memory_space<vmem>>, vector<8x1xf32>
    %19 = arith.extui %10 : vector<8x128xi1> to vector<8x128xi32>
    %20 = arith.sitofp %19 : vector<8x128xi32> to vector<8x128xf32>
    %cst_11 = arith.constant dense<0.000000e+00> : vector<8xf32>
    %21 = vector.multi_reduction <add>, %20, %cst_11 [1] : vector<8x128xf32> to vector<8xf32>
    %22 = vector.shape_cast %21 : vector<8xf32> to vector<8x1xf32>
    %23 = arith.addf %18, %22 : vector<8x1xf32>
    %c0_12 = arith.constant 0 : index
    %c0_13 = arith.constant 0 : index
    %24 = vector.load %arg7[%c0_12, %c0_13] : memref<8x1xf32, #tpu.memory_space<vmem>>, vector<8x1xf32>
    tpu.vector_store %arg7[%c0_12, %c0_13], %23 {strides = array<i32>} : memref<8x1xf32, #tpu.memory_space<vmem>>, vector<8x1xf32>,
    %c0_i32_14 = arith.constant 0 : i32
    %25 = arith.cmpi eq, %arg2, %c0_i32_14 : i32
    %26 = arith.extui %25 : i1 to i32
    %c0_i32_15 = arith.constant 0 : i32
    %27 = arith.cmpi ne, %26, %c0_i32_15 : i32
    scf.if %27 {
      %c0_16 = arith.constant 0 : index
      %c0_17 = arith.constant 0 : index
      %28 = vector.load %arg7[%c0_16, %c0_17] : memref<8x1xf32, #tpu.memory_space<vmem>>, vector<8x1xf32>
      %cst_18 = arith.constant 1.000000e+00 : f32
      %29 = vector.broadcast %cst_18 : f32 to vector<8x1xf32>
      %30 = arith.maximumf %28, %29 : vector<8x1xf32>
      %cst_19 = arith.constant 1.000000e+00 : f32
      %31 = vector.broadcast %cst_19 : f32 to vector<8x1xf32>
      %32 = arith.divf %31, %30 : vector<8x1xf32>
      %c0_20 = arith.constant 0 : index
      %c0_21 = arith.constant 0 : index
      %33 = vector.load %arg6[%c0_20, %c0_21] : memref<8x128xf32, #tpu.memory_space<vmem>>, vector<8x128xf32>
      %34 = vector.broadcast %32 : vector<8x1xf32> to vector<8x128xf32>
      %35 = arith.mulf %33, %34 : vector<8x128xf32>
      %c0_22 = arith.constant 0 : index
      %c0_23 = arith.constant 0 : index
      %36 = vector.load %arg5[%c0_22, %c0_23] : memref<8x128xf32, #tpu.memory_space<vmem>>, vector<8x128xf32>
      tpu.vector_store %arg5[%c0_22, %c0_23], %35 {strides = array<i32>} : memref<8x128xf32, #tpu.memory_space<vmem>>, vector<8x128xf32>,
    } else {
    }
    return
  }
  func.func @transform_0(%arg0: i32, %arg1: i32, %arg2: i32) -> (i32, i32) {
    %c0_i32 = arith.constant 0 : i32
    %c0_i32_0 = arith.constant 0 : i32
    return %c0_i32, %arg2 : i32, i32
  }
  func.func @transform_1(%arg0: i32, %arg1: i32, %arg2: i32) -> (i32, i32) {
    %c0_i32 = arith.constant 0 : i32
    return %arg2, %arg1 : i32, i32
  }
  func.func @transform_2(%arg0: i32, %arg1: i32, %arg2: i32) -> (i32, i32) {
    %c0_i32 = arith.constant 0 : i32
    return %arg0, %arg1 : i32, i32
  }
}

</mosaic_0001>

<llo_original>
// kernel: tpu_custom_call.1
$region0: #{tpu_custom_call.1}
  #allocation0 [shape = 'u32[]', space=smem, size = 0x4, offset = 0x4, fixed_abs, tag = 'smem constant byte address 0x4 - core index']
  #allocation1 [shape = 'u32[72,128]{1,0:T(1,128)}', space=vmem, size = 0x9000, scoped, tag = 'internal scratch']
  #allocation2 [shape = 'f32[8,128]{1,0:T(8,128)}', space=vmem, size = 0x1000, scoped, tag = 'scratch operand']
  #allocation3 [shape = 'f32[8,1]{1,0:T(8,128)}', space=vmem, size = 0x1000, scoped, tag = 'scratch operand']
  %s0 = inlined_call_operand.hbm [shape: s32[1,128], index: 0, kind: input, shape index: {}]
  %s1 = inlined_call_operand.hbm [shape: f32[128,128], index: 1, kind: input, shape index: {}]
  %s2 = inlined_call_operand.hbm [shape: f32[8,128], index: 2, kind: output, shape index: {}]
  %s3 = sld [smem:[#allocation0]]
  $region34: #{tpu_custom_call.1} parent=0
    _
  %s5 = ssub.s32 1, %s3
  %s6 = scalar_select 0, %s5, %s3
  $region1: #{tpu_custom_call.1} parent=0
    #allocation4 [shape = 'u8[512]{0}', space=vmem, size = 0x400, scoped, tag = 'input window, operand 0, single buffered']
    #allocation5 [shape = 's32[1]{0}', space=sflag, size = 0x4, scoped, tag = 'scoped memory for tpu_custom_call.1']
    #allocation6 [shape = 's32[1]{0}', space=sflag, size = 0x4, scoped, tag = 'scoped memory for tpu_custom_call.1']
    #allocation7 [shape = 'u8[65536]{0}', space=vmem, size = 0x10000, scoped, tag = 'input window, operand 1, single buffered']
    #allocation8 [shape = 's32[1]{0}', space=sflag, size = 0x4, scoped, tag = 'scoped memory for tpu_custom_call.1']
    #allocation9 [shape = 'u8[4096]{0}', space=vmem, size = 0x1000, scoped, tag = 'output window, operand 0, single buffered']
    %7 = vsyncpa [#allocation5], 0
    %8 = vsyncpa [#allocation8], 0
    %9 = vsyncpa [#allocation6], 0
    // Predicated region
    $region2: #{tpu_custom_call.1} parent=1 // pred_check
      _
    $region3: #{tpu_custom_call.1} parent=1 // pred_check_branch
      %11 = sbr.rel (0) target = $region5
    $region4: #{tpu_custom_call.1} parent=1 // pred_region
      %13 = vsyncadd [#allocation5], 0
      %s15 = sshll.u32 %s0, 4
      %s16 = int_to_ptr.hbm [resolvable:$true] %s15
      %s17 = sshll.u32 [#allocation4], 4
      %s18 = int_to_ptr.vmem [resolvable:$true] %s17
      %20 = dma.hbm_to_vmem [thread:$0]  %s16, 16, %s18, [#allocation5]
    $region5: #{tpu_custom_call.1} parent=1 // pred_fallthru
      _
    // Predicated region
    $region6: #{tpu_custom_call.1} parent=1 // pred_check
      _
    $region7: #{tpu_custom_call.1} parent=1 // pred_check_branch
      %22 = sbr.rel (0) target = $region9
    $region8: #{tpu_custom_call.1} parent=1 // pred_region
      %24 = vsyncadd [#allocation8], 0
      %s25 = sshll.u32 %s1, 4
      %s26 = int_to_ptr.hbm [resolvable:$true] %s25
      %s27 = sshll.u32 [#allocation7], 4
      %s28 = int_to_ptr.vmem [resolvable:$true] %s27
      %33 = dma.hbm_to_vmem [thread:$0]  %s26, 2048, %s28, [#allocation8], 128, 128, 8
    $region9: #{tpu_custom_call.1} parent=1 // pred_fallthru
      _
    // Predicated region
    $region10: #{tpu_custom_call.1} parent=1 // pred_check
      _
    $region11: #{tpu_custom_call.1} parent=1 // pred_check_branch
      %35 = sbr.rel (0) target = $region13
    $region12: #{tpu_custom_call.1} parent=1 // pred_region
      %37 = dma.done [#allocation5], 16
    $region13: #{tpu_custom_call.1} parent=1 // pred_fallthru
      _
    // Predicated region
    $region14: #{tpu_custom_call.1} parent=1 // pred_check
      _
    $region15: #{tpu_custom_call.1} parent=1 // pred_check_branch
      %39 = sbr.rel (0) target = $region17
    $region16: #{tpu_custom_call.1} parent=1 // pred_region
      %41 = dma.done [#allocation8], 2048
    $region17: #{tpu_custom_call.1} parent=1 // pred_fallthru
      _
    %p42 = scmp.eq.s32.totalorder 0, 0
    // Predicated region
    $region18: #{tpu_custom_call.1} parent=1 // pred_check
      %p43 = pneg %p42
    $region19: #{tpu_custom_call.1} parent=1 // pred_check_branch
      %45 = sbr.rel (%p43) target = $region21
    $region20: #{tpu_custom_call.1} parent=1 // pred_region
      %46 = vst [vmem:[#allocation2] sm:$0xff] 0.0
      %vm47 = vcmask 7168
      %48 = vst.msk [vmem:[#allocation3] sm:$0xff] %vm47, 0.0
    $region21: #{tpu_custom_call.1} parent=1 // pred_fallthru
      _
    %v49 = vld [vmem:[#allocation4] sm:$0x1]
    %v50 = vlaneseq
    %v51 = vshrl.u32 %v50, 7
    %s52 = smul.u32 0, 8
    %s53 = sadd.s32 %s52, 8
    %v54 = vstv %s53
    %v55 = vadd.s32 %v51, %v54
    %v56 = vperm.slane %v49, 0
    %vm57 = vcmp.eq.s32.totalorder %v55, %v56
    %v58 = vld [vmem:[#allocation2] sm:$0xff]
    %v59 = vsel %vm57, 1, 0
    %v60 = vcvt.s32.f32 %v59
    %v61 = vld [vmem:[#allocation7] sm:$0xff]
    %v62 = vld [vmem:[#allocation7 + $0x8] sm:$0xff]
    %v63 = vld [vmem:[#allocation7 + $0x10] sm:$0xff]
    %v64 = vld [vmem:[#allocation7 + $0x18] sm:$0xff]
    %v65 = vld [vmem:[#allocation7 + $0x20] sm:$0xff]
    %v66 = vld [vmem:[#allocation7 + $0x28] sm:$0xff]
    %v67 = vld [vmem:[#allocation7 + $0x30] sm:$0xff]
    %v68 = vld [vmem:[#allocation7 + $0x38] sm:$0xff]
    %v69 = vld [vmem:[#allocation7 + $0x40] sm:$0xff]
    %v70 = vld [vmem:[#allocation7 + $0x48] sm:$0xff]
    %v71 = vld [vmem:[#allocation7 + $0x50] sm:$0xff]
    %v72 = vld [vmem:[#allocation7 + $0x58] sm:$0xff]
    %v73 = vld [vmem:[#allocation7 + $0x60] sm:$0xff]
    %v74 = vld [vmem:[#allocation7 + $0x68] sm:$0xff]
    %v75 = vld [vmem:[#allocation7 + $0x70] sm:$0xff]
    %v76 = vld [vmem:[#allocation7 + $0x78] sm:$0xff]
    %77 = vmatpush.msra.mxu0 %v76
    %78 = vmatpush.msra.mxu0 %v75
    %79 = vmatpush.msra.mxu0 %v74
    %80 = vmatpush.msra.mxu0 %v73
    %81 = vmatpush.msra.mxu0 %v72
    %82 = vmatpush.msra.mxu0 %v71
    %83 = vmatpush.msra.mxu0 %v70
    %84 = vmatpush.msra.mxu0 %v69
    %85 = vmatpush.msra.mxu0 %v68
    %86 = vmatpush.msra.mxu0 %v67
    %87 = vmatpush.msra.mxu0 %v66
    %88 = vmatpush.msra.mxu0 %v65
    %89 = vmatpush.msra.mxu0 %v64
    %90 = vmatpush.msra.mxu0 %v63
    %91 = vmatpush.msra.mxu0 %v62
    %92 = vmatpush.msra.mxu0 %v61
    %93 = vmatmul.f32.gmra.mxu0 %v60
    %v94 = vpop.f32.mrf.mxu0
    %v95 = vadd.f32 0.0, %v94
    %96 = vdwg.mxu0
    %v97 = vadd.f32 %v58, %v95
    %98 = vst [vmem:[#allocation2] sm:$0xff] %v97
    %v99 = vld [vmem:[#allocation3] sm:$0xff]
    %100 = vadd.xlane.f32.xlu0 %v60
    %v101 = vpop.xlane.xlu0 %100
    %v102 = vadd.f32 %v99, %v101
    %vm103 = vcmask 7168
    %104 = vst.msk [vmem:[#allocation3] sm:$0xff] %vm103, %v102
    // Predicated region
    $region22: #{tpu_custom_call.1} parent=1 // pred_check
      %p105 = pneg %p42
    $region23: #{tpu_custom_call.1} parent=1 // pred_check_branch
      %107 = sbr.rel (%p105) target = $region25
    $region24: #{tpu_custom_call.1} parent=1 // pred_region
      %v108 = vld [vmem:[#allocation3] sm:$0xff]
      %v109 = vmax.f32 %v108, 1.0
      %v110 = vrcp.pop %v109
      %v111 = vmul.f32 %v109, %v110
      %v112 = vsub.f32 1.0, %v111
      %v113 = vmul.f32 %v110, %v112
      %v114 = vadd.f32 %v110, %v113
      %vm115 = vweird.f32 %v109
      %vm116 = vweird.f32 %v110
      %vm117 = vmor %vm115, %vm116
      %v118 = vsel %vm117, %v110, %v114
      %v119 = vand.u32 2147483647, %v109
      %vm120 = vcmp.eq.f32.partialorder %v119, 8.507059e+37
      %v121 = vand.u32 %v109, 2147483648
      %v122 = vor.u32 1.1754944e-38, %v121
      %v123 = vsel %vm120, %v122, %v118
      %v124 = vmul.f32 1.0, %v123
      %v125 = vld [vmem:[#allocation2] sm:$0xff]
      %127 = vset.pattern.permute.xlu0 0
      %128 = vperm.xlu0 %127, %v124
      %v129 = vpop.permute.xlu0 %128
      %v131 = vmul.f32 %v125, %v129
      %132 = vst [vmem:[#allocation9] sm:$0xff] %v131
    $region25: #{tpu_custom_call.1} parent=1 // pred_fallthru
      _
    // Predicated region
    $region26: #{tpu_custom_call.1} parent=1 // pred_check
      _
    $region27: #{tpu_custom_call.1} parent=1 // pred_check_branch
      %134 = sbr.rel (0) target = $region29
    $region28: #{tpu_custom_call.1} parent=1 // pred_region
      %136 = vsyncadd [#allocation6], 0
      %s138 = sshll.u32 [#allocation9], 4
      %s139 = int_to_ptr.vmem [resolvable:$true] %s138
      %s140 = sshll.u32 %s2, 4
      %s141 = int_to_ptr.hbm [resolvable:$true] %s140
      %143 = dma.vmem_to_hbm [thread:$0]  %s139, 128, %s141, [#allocation6]
    $region29: #{tpu_custom_call.1} parent=1 // pred_fallthru
      _
    // Predicated region
    $region30: #{tpu_custom_call.1} parent=1 // pred_check
      _
    $region31: #{tpu_custom_call.1} parent=1 // pred_check_branch
      %145 = sbr.rel (0) target = $region33
    $region32: #{tpu_custom_call.1} parent=1 // pred_region
      %147 = dma.done [#allocation6], 128
    $region33: #{tpu_custom_call.1} parent=1 // pred_fallthru
      _
    %148 = vsyncpa [#allocation5], 1
    %149 = vsyncpa [#allocation8], 1
    %150 = vsyncpa [#allocation6], 1

</llo_original>
